<compile_context>
chip_gen: v6e
topology: v6e:2x2x1
jax: 0.10.0
libtpu: 0.0.40
codegen_flags: <defaults>
</compile_context>

<pallas_src>
import functools

import jax
import jax.numpy as jnp
from jax.experimental import pallas as pl
from jax.experimental.pallas import tpu as pltpu


def _round_up(x, m):
    return ((x + m - 1) // m) * m


def lora_qkv_kernel(x_ref, wq_ref, wk_ref, wv_ref,
                    bq_ref, bk_ref, bv_ref,
                    wa_ref, wb_ref, o_ref, *, compute_dtype):
    """One (TM, C) token tile -> one (TM, 3C) output tile.

    wa = [Wa_q | Wa_v]           (C, 2r)  fused LoRA down-projection
    wb = blockdiag(Wb_q, Wb_v)   (2r, 2C) -> [delta_q | delta_v] in one matmul
    """
    C = wq_ref.shape[1]
    # Cast to MXU compute dtype on the VPU (hidden under MXU time); the stream
    # from HBM stays in the caller's dtype.
    x = x_ref[...].astype(compute_dtype)                  # (TM, C)

    # ---- fused LoRA path: x -> (TM, 2r) -> (TM, 2C) = [dq | dv] -------------
    xa = jnp.dot(x, wa_ref[...], preferred_element_type=jnp.float32)
    dqv = jnp.dot(xa.astype(compute_dtype), wb_ref[...],
                  preferred_element_type=jnp.float32)     # (TM, 2C) f32

    # ---- base projections, epilogue interleaved (one f32 third live at a time)
    q = jnp.dot(x, wq_ref[...], preferred_element_type=jnp.float32)
    o_ref[:, :C] = (q + bq_ref[...] + dqv[:, :C]).astype(o_ref.dtype)

    k = jnp.dot(x, wk_ref[...], preferred_element_type=jnp.float32)
    o_ref[:, C:2 * C] = (k + bk_ref[...]).astype(o_ref.dtype)

    v = jnp.dot(x, wv_ref[...], preferred_element_type=jnp.float32)
    o_ref[:, 2 * C:] = (v + bv_ref[...] + dqv[:, C:]).astype(o_ref.dtype)


def _vmem_budget_bytes():
    """~85% of this generation's VMEM capacity (fallback 64 MiB if unknown)."""
    try:
        cap = int(pltpu.get_tpu_info().vmem_capacity_bytes)
    except Exception:
        cap = 64 * 1024 * 1024
    return min(int(0.85 * cap), cap - (4 << 20))


def _pick_tm(M, C, r, x_bytes, out_bytes, cb, budget):
    """Largest token tile whose streamed buffers + resident weights + in-kernel
    temporaries fit the VMEM budget."""
    resident = (3 * C * C + C * 2 * r + 2 * r * 2 * C) * cb + 3 * C * 4
    tm_cap = max(8, _round_up(M, 8))
    for tm in (1024, 512, 256, 128, 64, 32, 16, 8):
        tm_eff = min(tm, tm_cap)
        stream = 2 * tm_eff * C * x_bytes + 2 * tm_eff * 3 * C * out_bytes
        temps = (tm_eff * C * cb            # x cast to compute dtype
                 + tm_eff * 2 * C * 4       # dqv (f32)
                 + tm_eff * C * 4           # one output third accumulator (f32)
                 + tm_eff * 2 * r * 4)      # xa (f32)
        if resident + stream + temps + (2 << 20) <= budget:
            return tm_eff
    return min(8, tm_cap)


def lora_qkv(x, w_qkv, b_qkv, wa_q, wb_q, wa_v, wb_v,
             *, compute_dtype=jnp.bfloat16, out_dtype=None, block_m=None):
    """LoRA_qkv forward.

    x     : (B, N, C)
    w_qkv : (C, 3C)  base qkv weight, stored (in, out)
    b_qkv : (3C,)    base qkv bias
    wa_q  : (C, r)   LoRA q down-proj    wb_q : (r, C)  LoRA q up-proj
    wa_v  : (C, r)   LoRA v down-proj    wb_v : (r, C)  LoRA v up-proj
    returns (B, N, 3C)   (dtype = x.dtype unless out_dtype given)
    """
    B, N, C = x.shape
    r = wa_q.shape[1]
    out_dtype = x.dtype if out_dtype is None else out_dtype
    M = B * N

    cb = jnp.dtype(compute_dtype).itemsize
    xb = jnp.dtype(x.dtype).itemsize
    ob = jnp.dtype(out_dtype).itemsize

    budget = _vmem_budget_bytes()
    if block_m is None:
        tm = _pick_tm(M, C, r, xb, ob, cb, budget)
    else:
        tm = min(block_m, max(8, _round_up(M, 8)))
    grid = (pl.cdiv(M, tm),)          # ragged tail handled by Pallas masking

    # x streamed in its original dtype (cast happens in-kernel); no pad.
    x_flat = x.reshape(M, C)

    # ---- wrapper-side weight prep (one-time under jit) -----------------------
    wq = w_qkv[:, :C].astype(compute_dtype)
    wk = w_qkv[:, C:2 * C].astype(compute_dtype)
    wv = w_qkv[:, 2 * C:].astype(compute_dtype)
    bq = b_qkv[:C].reshape(1, C).astype(jnp.float32)
    bk = b_qkv[C:2 * C].reshape(1, C).astype(jnp.float32)
    bv = b_qkv[2 * C:].reshape(1, C).astype(jnp.float32)

    # Fuse the two rank-r "A" matmuls into one (C, 2r); block-diagonal "B" so
    # a single (TM,2r)@(2r,2C) emits [delta_q | delta_v] already laid out.
    wa = jnp.concatenate([wa_q, wa_v], axis=1).astype(compute_dtype)       # (C, 2r)
    wb = jnp.zeros((2 * r, 2 * C), jnp.float32)
    wb = wb.at[:r, :C].set(wb_q.astype(jnp.float32))
    wb = wb.at[r:, C:].set(wb_v.astype(jnp.float32))
    wb = wb.astype(compute_dtype)                                          # (2r, 2C)

    # TODO(synk): for pure inference the LoRA deltas could be folded into w_qkv
    # (w_qkv[:, :C] += Wa_q@Wb_q; w_qkv[:, 2C:] += Wa_v@Wb_v), removing the two
    # tiny-K MXU passes entirely; kept separate to preserve trainable-LoRA
    # semantics of the module.
    # TODO(synk): for C >= ~2k add an N-tiling grid axis (stream Wq/Wk/Wv per
    # N-tile) -- resident 3C^2 weights would collide with v7x's 64 MiB VMEM.

    token_spec = pl.BlockSpec((tm, C), lambda i: (i, 0))
    out_spec = pl.BlockSpec((tm, 3 * C), lambda i: (i, 0))

    def resident(shape):
        # Constant index_map + single buffer: weights DMA'd once, no 2x copy.
        return pl.BlockSpec(shape, lambda i: (0, 0),
                            pipeline_mode=pl.Buffered(1))

    in_specs = [
        token_spec,                 # x tile (streamed, original dtype)
        resident((C, C)),           # wq
        resident((C, C)),           # wk
        resident((C, C)),           # wv
        resident((1, C)),           # bq
        resident((1, C)),           # bk
        resident((1, C)),           # bv
        resident((C, 2 * r)),       # wa (fused)
        resident((2 * r, 2 * C)),   # wb (block-diagonal)
    ]

    m_eff = grid[0] * tm
    flops = (2 * m_eff * C * 3 * C          # base qkv GEMMs
             + 2 * m_eff * C * 2 * r        # LoRA down
             + 2 * m_eff * 2 * r * 2 * C)   # LoRA up
    bytes_accessed = (M * C * xb
                      + (3 * C * C + C * 2 * r + 2 * r * 2 * C) * cb
                      + 3 * C * 4
                      + M * 3 * C * ob)

    kernel = functools.partial(lora_qkv_kernel, compute_dtype=compute_dtype)

    out = pl.pallas_call(
        kernel,
        out_shape=jax.ShapeDtypeStruct((M, 3 * C), out_dtype),
        grid=grid,
        in_specs=in_specs,
        out_specs=out_spec,
        compiler_params=pltpu.CompilerParams(
            # Token tiles are independent -> shard across TCs on v7x megacore.
            dimension_semantics=("parallel",),
            vmem_limit_bytes=int(budget),
        ),
        cost_estimate=pl.CostEstimate(flops=flops, transcendentals=0,
                                      bytes_accessed=bytes_accessed),
    )(x_flat, wq, wk, wv, bq, bk, bv, wa, wb)

    return out.reshape(B, N, 3 * C)


def reference(x, w_qkv, b_qkv, wa_q, wb_q, wa_v, wb_v):
    B, N, C = x.shape
    qkv = jnp.einsum('bnc,cd->bnd', x, w_qkv) + b_qkv
    new_q = jnp.einsum('bnc,cr->bnr', x, wa_q) @ wb_q
    new_v = jnp.einsum('bnc,cr->bnr', x, wa_v) @ wb_v
    qkv = qkv.at[:, :, :C].add(new_q)
    qkv = qkv.at[:, :, -C:].add(new_v)
    return qkv


if __name__ == "__main__":
    # Small shapes consistent with the module: tokens (B, N, C), LoRA rank r.
    B, N, C, r = 2, 8, 32, 4

    key = jax.random.PRNGKey(0)
    kx, kw, kb, k1, k2, k3, k4 = jax.random.split(key, 7)

    x = jax.random.normal(kx, (B, N, C), dtype=jnp.float32)

    # nn.Linear(C, 3C, bias=True) -> stored here as (in, out) = (C, 3C)
    w_qkv = jax.random.normal(kw, (C, 3 * C), dtype=jnp.float32) * 0.05
    b_qkv = jax.random.normal(kb, (3 * C,), dtype=jnp.float32) * 0.05

    # LoRA layers: w_a: C->r, w_b: r->C (no bias), stored as (in, out)
    wa_q = jax.random.normal(k1, (C, r), dtype=jnp.float32) * 0.05
    wb_q = jax.random.normal(k2, (r, C), dtype=jnp.float32) * 0.05
    wa_v = jax.random.normal(k3, (C, r), dtype=jnp.float32) * 0.05
    wb_v = jax.random.normal(k4, (r, C), dtype=jnp.float32) * 0.05

    fn = jax.jit(lora_qkv)
    out = jax.block_until_ready(fn(x, w_qkv, b_qkv, wa_q, wb_q, wa_v, wb_v))

    ref = reference(x, w_qkv, b_qkv, wa_q, wb_q, wa_v, wb_v)
    assert out.shape == (B, N, 3 * C)
    # bf16 MXU compute with f32 accumulation vs f32 reference -> loose tolerance.
    assert jnp.allclose(out, ref, atol=2e-2, rtol=2e-2), "mismatch vs reference"

    print("KERNEL_OK")
</pallas_src>

<mosaic_0001>
module attributes {stable_mosaic.version = 11 : i64} {
  func.func @lora_qkv_kernel(%arg0: i32, %arg1: memref<16x32xf32, #tpu.memory_space<vmem>>, %arg2: memref<32x32xbf16, #tpu.memory_space<vmem>>, %arg3: memref<32x32xbf16, #tpu.memory_space<vmem>>, %arg4: memref<32x32xbf16, #tpu.memory_space<vmem>>, %arg5: memref<1x32xf32, #tpu.memory_space<vmem>>, %arg6: memref<1x32xf32, #tpu.memory_space<vmem>>, %arg7: memref<1x32xf32, #tpu.memory_space<vmem>>, %arg8: memref<32x8xbf16, #tpu.memory_space<vmem>>, %arg9: memref<8x64xbf16, #tpu.memory_space<vmem>>, %arg10: memref<16x96xf32, #tpu.memory_space<vmem>>) attributes {dimension_semantics = [#tpu.dimension_semantics<parallel>], iteration_bounds = array<i64: 1>, scalar_prefetch = 0 : i64, scratch_operands = 0 : i64, tpu.core_type = #tpu.core_type<tc>, window_params = [{transform_indices = @transform_0, window_bounds = array<i64: 16, 32>}, {pipeline_mode = #tpu.pipeline_mode<synchronous>, transform_indices = @transform_1, window_bounds = array<i64: 32, 32>}, {pipeline_mode = #tpu.pipeline_mode<synchronous>, transform_indices = @transform_2, window_bounds = array<i64: 32, 32>}, {pipeline_mode = #tpu.pipeline_mode<synchronous>, transform_indices = @transform_3, window_bounds = array<i64: 32, 32>}, {pipeline_mode = #tpu.pipeline_mode<synchronous>, transform_indices = @transform_4, window_bounds = array<i64: 1, 32>}, {pipeline_mode = #tpu.pipeline_mode<synchronous>, transform_indices = @transform_5, window_bounds = array<i64: 1, 32>}, {pipeline_mode = #tpu.pipeline_mode<synchronous>, transform_indices = @transform_6, window_bounds = array<i64: 1, 32>}, {pipeline_mode = #tpu.pipeline_mode<synchronous>, transform_indices = @transform_7, window_bounds = array<i64: 32, 8>}, {pipeline_mode = #tpu.pipeline_mode<synchronous>, transform_indices = @transform_8, window_bounds = array<i64: 8, 64>}, {transform_indices = @transform_9, window_bounds = array<i64: 16, 96>}]} {
    %c0 = arith.constant 0 : index
    %c0_0 = arith.constant 0 : index
    %0 = vector.load %arg1[%c0, %c0_0] : memref<16x32xf32, #tpu.memory_space<vmem>>, vector<16x32xf32>
    %1 = arith.truncf %0 : vector<16x32xf32> to vector<16x32xbf16>
    %c0_1 = arith.constant 0 : index
    %c0_2 = arith.constant 0 : index
    %2 = vector.load %arg8[%c0_1, %c0_2] : memref<32x8xbf16, #tpu.memory_space<vmem>>, vector<32x8xbf16>
    %cst = arith.constant dense<0.000000e+00> : vector<16x8xf32>
    %3 = tpu.matmul %1, %2, %cst {dimension_numbers = #tpu.dot_dimension_numbers<[1], [0], [0], [1], [0, 0, 1, 1], [], []>} : vector<16x32xbf16>, vector<32x8xbf16>, vector<16x8xf32> -> vector<16x8xf32>
    %4 = arith.truncf %3 : vector<16x8xf32> to vector<16x8xbf16>
    %c0_3 = arith.constant 0 : index
    %c0_4 = arith.constant 0 : index
    %5 = vector.load %arg9[%c0_3, %c0_4] : memref<8x64xbf16, #tpu.memory_space<vmem>>, vector<8x64xbf16>
    %cst_5 = arith.constant dense<0.000000e+00> : vector<16x64xf32>
    %6 = tpu.matmul %4, %5, %cst_5 {dimension_numbers = #tpu.dot_dimension_numbers<[1], [0], [0], [1], [0, 0, 1, 1], [], []>} : vector<16x8xbf16>, vector<8x64xbf16>, vector<16x64xf32> -> vector<16x64xf32>
    %c0_6 = arith.constant 0 : index
    %c0_7 = arith.constant 0 : index
    %7 = vector.load %arg2[%c0_6, %c0_7] : memref<32x32xbf16, #tpu.memory_space<vmem>>, vector<32x32xbf16>
    %cst_8 = arith.constant dense<0.000000e+00> : vector<16x32xf32>
    %8 = tpu.matmul %1, %7, %cst_8 {dimension_numbers = #tpu.dot_dimension_numbers<[1], [0], [0], [1], [0, 0, 1, 1], [], []>} : vector<16x32xbf16>, vector<32x32xbf16>, vector<16x32xf32> -> vector<16x32xf32>
    %c0_9 = arith.constant 0 : index
    %c0_10 = arith.constant 0 : index
    %9 = vector.load %arg5[%c0_9, %c0_10] : memref<1x32xf32, #tpu.memory_space<vmem>>, vector<1x32xf32>
    %10 = vector.broadcast %9 : vector<1x32xf32> to vector<16x32xf32>
    %11 = arith.addf %8, %10 : vector<16x32xf32>
    %12 = vector.extract_strided_slice %6 {offsets = [0, 0], sizes = [16, 32], strides = [1, 1]} : vector<16x64xf32> to vector<16x32xf32>
    %13 = arith.addf %11, %12 : vector<16x32xf32>
    %c0_11 = arith.constant 0 : index
    %c0_12 = arith.constant 0 : index
    %14 = vector.load %arg10[%c0_11, %c0_12] : memref<16x96xf32, #tpu.memory_space<vmem>>, vector<16x32xf32>
    tpu.vector_store %arg10[%c0_11, %c0_12], %13 {strides = array<i32>} : memref<16x96xf32, #tpu.memory_space<vmem>>, vector<16x32xf32>,
    %c0_13 = arith.constant 0 : index
    %c0_14 = arith.constant 0 : index
    %15 = vector.load %arg3[%c0_13, %c0_14] : memref<32x32xbf16, #tpu.memory_space<vmem>>, vector<32x32xbf16>
    %cst_15 = arith.constant dense<0.000000e+00> : vector<16x32xf32>
    %16 = tpu.matmul %1, %15, %cst_15 {dimension_numbers = #tpu.dot_dimension_numbers<[1], [0], [0], [1], [0, 0, 1, 1], [], []>} : vector<16x32xbf16>, vector<32x32xbf16>, vector<16x32xf32> -> vector<16x32xf32>
    %c0_16 = arith.constant 0 : index
    %c0_17 = arith.constant 0 : index
    %17 = vector.load %arg6[%c0_16, %c0_17] : memref<1x32xf32, #tpu.memory_space<vmem>>, vector<1x32xf32>
    %18 = vector.broadcast %17 : vector<1x32xf32> to vector<16x32xf32>
    %19 = arith.addf %16, %18 : vector<16x32xf32>
    %c0_18 = arith.constant 0 : index
    %c32 = arith.constant 32 : index
    %20 = vector.load %arg10[%c0_18, %c32] : memref<16x96xf32, #tpu.memory_space<vmem>>, vector<16x32xf32>
    tpu.vector_store %arg10[%c0_18, %c32], %19 {strides = array<i32>} : memref<16x96xf32, #tpu.memory_space<vmem>>, vector<16x32xf32>,
    %c0_19 = arith.constant 0 : index
    %c0_20 = arith.constant 0 : index
    %21 = vector.load %arg4[%c0_19, %c0_20] : memref<32x32xbf16, #tpu.memory_space<vmem>>, vector<32x32xbf16>
    %cst_21 = arith.constant dense<0.000000e+00> : vector<16x32xf32>
    %22 = tpu.matmul %1, %21, %cst_21 {dimension_numbers = #tpu.dot_dimension_numbers<[1], [0], [0], [1], [0, 0, 1, 1], [], []>} : vector<16x32xbf16>, vector<32x32xbf16>, vector<16x32xf32> -> vector<16x32xf32>
    %c0_22 = arith.constant 0 : index
    %c0_23 = arith.constant 0 : index
    %23 = vector.load %arg7[%c0_22, %c0_23] : memref<1x32xf32, #tpu.memory_space<vmem>>, vector<1x32xf32>
    %24 = vector.broadcast %23 : vector<1x32xf32> to vector<16x32xf32>
    %25 = arith.addf %22, %24 : vector<16x32xf32>
    %26 = vector.extract_strided_slice %6 {offsets = [0, 32], sizes = [16, 32], strides = [1, 1]} : vector<16x64xf32> to vector<16x32xf32>
    %27 = arith.addf %25, %26 : vector<16x32xf32>
    %c0_24 = arith.constant 0 : index
    %c64 = arith.constant 64 : index
    %28 = vector.load %arg10[%c0_24, %c64] : memref<16x96xf32, #tpu.memory_space<vmem>>, vector<16x32xf32>
    tpu.vector_store %arg10[%c0_24, %c64], %27 {strides = array<i32>} : memref<16x96xf32, #tpu.memory_space<vmem>>, vector<16x32xf32>,
    return
  }
  func.func @transform_0(%arg0: i32) -> (i32, i32) {
    %c0_i32 = arith.constant 0 : i32
    %c0_i32_0 = arith.constant 0 : i32
    return %arg0, %c0_i32 : i32, i32
  }
  func.func @transform_1(%arg0: i32) -> (i32, i32) {
    %c0_i32 = arith.constant 0 : i32
    %c0_i32_0 = arith.constant 0 : i32
    %c0_i32_1 = arith.constant 0 : i32
    return %c0_i32, %c0_i32_0 : i32, i32
  }
  func.func @transform_2(%arg0: i32) -> (i32, i32) {
    %c0_i32 = arith.constant 0 : i32
    %c0_i32_0 = arith.constant 0 : i32
    %c0_i32_1 = arith.constant 0 : i32
    return %c0_i32, %c0_i32_0 : i32, i32
  }
  func.func @transform_3(%arg0: i32) -> (i32, i32) {
    %c0_i32 = arith.constant 0 : i32
    %c0_i32_0 = arith.constant 0 : i32
    %c0_i32_1 = arith.constant 0 : i32
    return %c0_i32, %c0_i32_0 : i32, i32
  }
  func.func @transform_4(%arg0: i32) -> (i32, i32) {
    %c0_i32 = arith.constant 0 : i32
    %c0_i32_0 = arith.constant 0 : i32
    %c0_i32_1 = arith.constant 0 : i32
    return %c0_i32, %c0_i32_0 : i32, i32
  }
  func.func @transform_5(%arg0: i32) -> (i32, i32) {
    %c0_i32 = arith.constant 0 : i32
    %c0_i32_0 = arith.constant 0 : i32
    %c0_i32_1 = arith.constant 0 : i32
    return %c0_i32, %c0_i32_0 : i32, i32
  }
  func.func @transform_6(%arg0: i32) -> (i32, i32) {
    %c0_i32 = arith.constant 0 : i32
    %c0_i32_0 = arith.constant 0 : i32
    %c0_i32_1 = arith.constant 0 : i32
    return %c0_i32, %c0_i32_0 : i32, i32
  }
  func.func @transform_7(%arg0: i32) -> (i32, i32) {
    %c0_i32 = arith.constant 0 : i32
    %c0_i32_0 = arith.constant 0 : i32
    %c0_i32_1 = arith.constant 0 : i32
    return %c0_i32, %c0_i32_0 : i32, i32
  }
  func.func @transform_8(%arg0: i32) -> (i32, i32) {
    %c0_i32 = arith.constant 0 : i32
    %c0_i32_0 = arith.constant 0 : i32
    %c0_i32_1 = arith.constant 0 : i32
    return %c0_i32, %c0_i32_0 : i32, i32
  }
  func.func @transform_9(%arg0: i32) -> (i32, i32) {
    %c0_i32 = arith.constant 0 : i32
    %c0_i32_0 = arith.constant 0 : i32
    return %arg0, %c0_i32 : i32, i32
  }
}

</mosaic_0001>

<llo_original>
// kernel: lora_qkv.1
$region0: #{lora_qkv.1}
  #allocation0 [shape = 'u32[]', space=smem, size = 0x4, offset = 0x4, fixed_abs, tag = 'smem constant byte address 0x4 - core index']
  #allocation1 [shape = 'u32[144,128]{1,0:T(1,128)}', space=vmem, size = 0x12000, scoped, tag = 'internal scratch']
  %s0 = inlined_call_operand.vmem [shape: f32[16,32], index: 0, kind: input, shape index: {}]
  %s1 = inlined_call_operand.vmem [shape: bf16[32,32], index: 1, kind: input, shape index: {}]
  %s2 = inlined_call_operand.vmem [shape: bf16[32,32], index: 2, kind: input, shape index: {}]
  %s3 = inlined_call_operand.vmem [shape: bf16[32,32], index: 3, kind: input, shape index: {}]
  %s4 = inlined_call_operand.vmem [shape: f32[1,32], index: 4, kind: input, shape index: {}]
  %s5 = inlined_call_operand.vmem [shape: f32[1,32], index: 5, kind: input, shape index: {}]
  %s6 = inlined_call_operand.vmem [shape: f32[1,32], index: 6, kind: input, shape index: {}]
  %s7 = inlined_call_operand.vmem [shape: bf16[32,8], index: 7, kind: input, shape index: {}]
  %s8 = inlined_call_operand.vmem [shape: bf16[8,64], index: 8, kind: input, shape index: {}]
  %s9 = inlined_call_operand.hbm [shape: f32[16,96], index: 9, kind: output, shape index: {}]
  %s10 = sld [smem:[#allocation0]]
  $region46: #{lora_qkv.1} parent=0
    _
  %s12 = ssub.s32 1, %s10
  %s13 = scalar_select 0, %s12, %s10
  $region1: #{lora_qkv.1} parent=0
    #allocation2 [shape = 'u8[8192]{0}', space=vmem, size = 0x2000, scoped, tag = 'output window, operand 0, single buffered']
    #allocation3 [shape = 's32[1]{0}', space=sflag, size = 0x4, scoped, tag = 'scoped memory for lora_qkv.1']
    %14 = vsyncpa [#allocation3], 0
    // Predicated region
    $region2: #{lora_qkv.1} parent=1 // pred_check
      _
    $region3: #{lora_qkv.1} parent=1 // pred_check_branch
      %16 = sbr.rel (0) target = $region5
    $region4: #{lora_qkv.1} parent=1 // pred_region
      _
    $region5: #{lora_qkv.1} parent=1 // pred_fallthru
      _
    // Predicated region
    $region6: #{lora_qkv.1} parent=1 // pred_check
      _
    $region7: #{lora_qkv.1} parent=1 // pred_check_branch
      %18 = sbr.rel (0) target = $region9
    $region8: #{lora_qkv.1} parent=1 // pred_region
      _
    $region9: #{lora_qkv.1} parent=1 // pred_fallthru
      _
    // Predicated region
    $region10: #{lora_qkv.1} parent=1 // pred_check
      _
    $region11: #{lora_qkv.1} parent=1 // pred_check_branch
      %20 = sbr.rel (0) target = $region13
    $region12: #{lora_qkv.1} parent=1 // pred_region
      _
    $region13: #{lora_qkv.1} parent=1 // pred_fallthru
      _
    // Predicated region
    $region14: #{lora_qkv.1} parent=1 // pred_check
      _
    $region15: #{lora_qkv.1} parent=1 // pred_check_branch
      %22 = sbr.rel (0) target = $region17
    $region16: #{lora_qkv.1} parent=1 // pred_region
      _
    $region17: #{lora_qkv.1} parent=1 // pred_fallthru
      _
    // Predicated region
    $region18: #{lora_qkv.1} parent=1 // pred_check
      _
    $region19: #{lora_qkv.1} parent=1 // pred_check_branch
      %24 = sbr.rel (0) target = $region21
    $region20: #{lora_qkv.1} parent=1 // pred_region
      _
    $region21: #{lora_qkv.1} parent=1 // pred_fallthru
      _
    // Predicated region
    $region22: #{lora_qkv.1} parent=1 // pred_check
      _
    $region23: #{lora_qkv.1} parent=1 // pred_check_branch
      %26 = sbr.rel (0) target = $region25
    $region24: #{lora_qkv.1} parent=1 // pred_region
      _
    $region25: #{lora_qkv.1} parent=1 // pred_fallthru
      _
    // Predicated region
    $region26: #{lora_qkv.1} parent=1 // pred_check
      _
    $region27: #{lora_qkv.1} parent=1 // pred_check_branch
      %28 = sbr.rel (0) target = $region29
    $region28: #{lora_qkv.1} parent=1 // pred_region
      _
    $region29: #{lora_qkv.1} parent=1 // pred_fallthru
      _
    // Predicated region
    $region30: #{lora_qkv.1} parent=1 // pred_check
      _
    $region31: #{lora_qkv.1} parent=1 // pred_check_branch
      %30 = sbr.rel (0) target = $region33
    $region32: #{lora_qkv.1} parent=1 // pred_region
      _
    $region33: #{lora_qkv.1} parent=1 // pred_fallthru
      _
    // Predicated region
    $region34: #{lora_qkv.1} parent=1 // pred_check
      _
    $region35: #{lora_qkv.1} parent=1 // pred_check_branch
      %32 = sbr.rel (0) target = $region37
    $region36: #{lora_qkv.1} parent=1 // pred_region
      _
    $region37: #{lora_qkv.1} parent=1 // pred_fallthru
      _
    %v34 = vld [vmem:[%s0] sm:$0xff]
    %v35 = vld [vmem:[%s0 + $0x8] sm:$0xff]
    %v36 = vpack.c.bf16 %v35, %v34
    %v37 = vld [vmem:[%s7] sm:$0xf]
    %v38 = vld [vmem:[%s7 + $0x4] sm:$0xf]
    %v39 = vld [vmem:[%s7 + $0x8] sm:$0xf]
    %v40 = vld [vmem:[%s7 + $0xc] sm:$0xf]
    %v45 = vunpack.c.l.b16 %v37
    %v46 = vunpack.c.l.b16 %v38
    %v47 = vunpack.c.l.b16 %v39
    %v48 = vunpack.c.l.b16 %v40
    %v49 = vpack.c.b16 %v46, %v45
    %v50 = vpack.c.b16 %v48, %v47
    %vm53 = vcmask 261120
    %v55 = vsel %vm53, %v36, 0
    %57 = vmatprep.subr.bf16.mxu0 0
    %58 = vmatpush1.bf16.msra.mxu0 0
    %59 = vmatprep.subr.bf16.mxu0 0
    %60 = vmatpush1.bf16.msra.mxu0 0
    %61 = vmatprep.subr.bf16.mxu0 0
    %62 = vmatpush1.bf16.msra.mxu0 0
    %63 = vmatprep.subr.bf16.mxu0 0
    %64 = vmatpush1.bf16.msra.mxu0 0
    %65 = vmatprep.subr.bf16.mxu0 0
    %66 = vmatpush1.bf16.msra.mxu0 0
    %67 = vmatprep.subr.bf16.mxu0 0
    %68 = vmatpush1.bf16.msra.mxu0 0
    %69 = vmatprep.subr.bf16.mxu0 0
    %70 = vmatpush1.bf16.msra.mxu0 %v50
    %71 = vmatprep.subr.bf16.mxu0 0
    %72 = vmatpush1.bf16.msra.mxu0 %v49
    %73 = vmatprep.subr.bf16.mxu0 0
    %74 = vmatpush2.bf16.msra.mxu0 0
    %75 = vmatprep.subr.bf16.mxu0 0
    %76 = vmatpush2.bf16.msra.mxu0 0
    %77 = vmatprep.subr.bf16.mxu0 0
    %78 = vmatpush2.bf16.msra.mxu0 0
    %79 = vmatprep.subr.bf16.mxu0 0
    %80 = vmatpush2.bf16.msra.mxu0 0
    %81 = vmatprep.subr.bf16.mxu0 0
    %82 = vmatpush2.bf16.msra.mxu0 0
    %83 = vmatprep.subr.bf16.mxu0 0
    %84 = vmatpush2.bf16.msra.mxu0 0
    %85 = vmatprep.subr.bf16.mxu0 0
    %86 = vmatpush2.bf16.msra.mxu0 0
    %87 = vmatprep.subr.bf16.mxu0 0
    %88 = vmatpush2.bf16.msra.mxu0 0
    %89 = vmatprep.mubr.bf16.mxu0 0
    %90 = vmatmul.mubr.bf16.gmra.mxu0 %v55
    %v91 = vpop.f32.mrf.mxu0
    %v92 = vadd.f32 0.0, %v91
    %v93 = vpop.f32.mrf.mxu0
    %v94 = vpop.f32.mrf.mxu0
    %v95 = vadd.f32 0.0, %v94
    %v96 = vpop.f32.mrf.mxu0
    %97 = vdwg.mxu0
    %v98 = vpack.c.bf16 %v95, %v92
    %v99 = vld [vmem:[%s8] sm:$0xf]
    %vm100 = vcmask 64512
    %v102 = vsel %vm100, %v98, 0
    %vm104 = vcmask 1043456
    %v106 = vsel %vm104, %v99, 0
    %108 = vmatprep.subr.bf16.mxu0 0
    %109 = vmatpush1.bf16.msra.mxu0 0
    %110 = vmatprep.subr.bf16.mxu0 0
    %111 = vmatpush1.bf16.msra.mxu0 0
    %112 = vmatprep.subr.bf16.mxu0 0
    %113 = vmatpush1.bf16.msra.mxu0 0
    %114 = vmatprep.subr.bf16.mxu0 0
    %115 = vmatpush1.bf16.msra.mxu0 0
    %116 = vmatprep.subr.bf16.mxu0 0
    %117 = vmatpush1.bf16.msra.mxu0 0
    %118 = vmatprep.subr.bf16.mxu0 0
    %119 = vmatpush1.bf16.msra.mxu0 0
    %120 = vmatprep.subr.bf16.mxu0 0
    %121 = vmatpush1.bf16.msra.mxu0 0
    %122 = vmatprep.subr.bf16.mxu0 0
    %123 = vmatpush1.bf16.msra.mxu0 %v106
    %124 = vmatprep.subr.bf16.mxu0 0
    %125 = vmatpush2.bf16.msra.mxu0 0
    %126 = vmatprep.subr.bf16.mxu0 0
    %127 = vmatpush2.bf16.msra.mxu0 0
    %128 = vmatprep.subr.bf16.mxu0 0
    %129 = vmatpush2.bf16.msra.mxu0 0
    %130 = vmatprep.subr.bf16.mxu0 0
    %131 = vmatpush2.bf16.msra.mxu0 0
    %132 = vmatprep.subr.bf16.mxu0 0
    %133 = vmatpush2.bf16.msra.mxu0 0
    %134 = vmatprep.subr.bf16.mxu0 0
    %135 = vmatpush2.bf16.msra.mxu0 0
    %136 = vmatprep.subr.bf16.mxu0 0
    %137 = vmatpush2.bf16.msra.mxu0 0
    %138 = vmatprep.subr.bf16.mxu0 0
    %139 = vmatpush2.bf16.msra.mxu0 0
    %140 = vmatprep.mubr.bf16.mxu0 0
    %141 = vmatmul.mubr.bf16.gmra.mxu0 %v102
    %v142 = vpop.f32.mrf.mxu0
    %v143 = vadd.f32 0.0, %v142
    %v144 = vpop.f32.mrf.mxu0
    %v145 = vpop.f32.mrf.mxu0
    %v146 = vadd.f32 0.0, %v145
    %v147 = vpop.f32.mrf.mxu0
    %148 = vdwg.mxu0
    %v149 = vld [vmem:[%s1] sm:$0xf]
    %v150 = vld [vmem:[%s1 + $0x4] sm:$0xf]
    %v151 = vld [vmem:[%s1 + $0x8] sm:$0xf]
    %v152 = vld [vmem:[%s1 + $0xc] sm:$0xf]
    %v153 = vld [vmem:[%s4] sm:$0x1]
    %v155 = vlaneseq
    %v156 = vshrl.u32 %v155, 7
    %v157 = vsub.s32 0, %v156
    %v158 = vrot.slane %v153, %v157
    %v164 = vunpack.c.l.b16 %v149
    %v165 = vunpack.c.l.b16 %v150
    %v166 = vunpack.c.l.b16 %v151
    %v167 = vunpack.c.l.b16 %v152
    %v168 = vpack.c.b16 %v165, %v164
    %v169 = vpack.c.b16 %v167, %v166
    %172 = vmatprep.subr.bf16.mxu0 0
    %173 = vmatpush1.bf16.msra.mxu0 0
    %174 = vmatprep.subr.bf16.mxu0 0
    %175 = vmatpush1.bf16.msra.mxu0 0
    %176 = vmatprep.subr.bf16.mxu0 0
    %177 = vmatpush1.bf16.msra.mxu0 0
    %178 = vmatprep.subr.bf16.mxu0 0
    %179 = vmatpush1.bf16.msra.mxu0 0
    %180 = vmatprep.subr.bf16.mxu0 0
    %181 = vmatpush1.bf16.msra.mxu0 0
    %182 = vmatprep.subr.bf16.mxu0 0
    %183 = vmatpush1.bf16.msra.mxu0 0
    %184 = vmatprep.subr.bf16.mxu0 0
    %185 = vmatpush1.bf16.msra.mxu0 %v169
    %186 = vmatprep.subr.bf16.mxu0 0
    %187 = vmatpush1.bf16.msra.mxu0 %v168
    %188 = vmatprep.subr.bf16.mxu0 0
    %189 = vmatpush2.bf16.msra.mxu0 0
    %190 = vmatprep.subr.bf16.mxu0 0
    %191 = vmatpush2.bf16.msra.mxu0 0
    %192 = vmatprep.subr.bf16.mxu0 0
    %193 = vmatpush2.bf16.msra.mxu0 0
    %194 = vmatprep.subr.bf16.mxu0 0
    %195 = vmatpush2.bf16.msra.mxu0 0
    %196 = vmatprep.subr.bf16.mxu0 0
    %197 = vmatpush2.bf16.msra.mxu0 0
    %198 = vmatprep.subr.bf16.mxu0 0
    %199 = vmatpush2.bf16.msra.mxu0 0
    %200 = vmatprep.subr.bf16.mxu0 0
    %201 = vmatpush2.bf16.msra.mxu0 0
    %202 = vmatprep.subr.bf16.mxu0 0
    %203 = vmatpush2.bf16.msra.mxu0 0
    %204 = vmatprep.mubr.bf16.mxu0 0
    %205 = vmatmul.mubr.bf16.gmra.mxu0 %v55
    %v206 = vpop.f32.mrf.mxu0
    %v207 = vadd.f32 %v158, %v206
    %v208 = vpop.f32.mrf.mxu0
    %v209 = vpop.f32.mrf.mxu0
    %v210 = vadd.f32 %v158, %v209
    %v211 = vpop.f32.mrf.mxu0
    %212 = vdwg.mxu0
    %v213 = vadd.f32 %v207, %v143
    %v214 = vadd.f32 %v210, %v146
    %215 = vst.msk [vmem:[#allocation2] sm:$0xff] %vm53, %v213
    %216 = vst.msk [vmem:[#allocation2 + $0x8] sm:$0xff] %vm53, %v214
    %v217 = vld [vmem:[%s2] sm:$0xf]
    %v218 = vld [vmem:[%s2 + $0x4] sm:$0xf]
    %v219 = vld [vmem:[%s2 + $0x8] sm:$0xf]
    %v220 = vld [vmem:[%s2 + $0xc] sm:$0xf]
    %v221 = vld [vmem:[%s5] sm:$0x1]
    %v223 = vlaneseq
    %v224 = vshrl.u32 %v223, 7
    %v225 = vsub.s32 0, %v224
    %v226 = vrot.slane %v221, %v225
    %v232 = vunpack.c.l.b16 %v217
    %v233 = vunpack.c.l.b16 %v218
    %v234 = vunpack.c.l.b16 %v219
    %v235 = vunpack.c.l.b16 %v220
    %v236 = vpack.c.b16 %v233, %v232
    %v237 = vpack.c.b16 %v235, %v234
    %240 = vmatprep.subr.bf16.mxu0 0
    %241 = vmatpush1.bf16.msra.mxu0 0
    %242 = vmatprep.subr.bf16.mxu0 0
    %243 = vmatpush1.bf16.msra.mxu0 0
    %244 = vmatprep.subr.bf16.mxu0 0
    %245 = vmatpush1.bf16.msra.mxu0 0
    %246 = vmatprep.subr.bf16.mxu0 0
    %247 = vmatpush1.bf16.msra.mxu0 0
    %248 = vmatprep.subr.bf16.mxu0 0
    %249 = vmatpush1.bf16.msra.mxu0 0
    %250 = vmatprep.subr.bf16.mxu0 0
    %251 = vmatpush1.bf16.msra.mxu0 0
    %252 = vmatprep.subr.bf16.mxu0 0
    %253 = vmatpush1.bf16.msra.mxu0 %v237
    %254 = vmatprep.subr.bf16.mxu0 0
    %255 = vmatpush1.bf16.msra.mxu0 %v236
    %256 = vmatprep.subr.bf16.mxu0 0
    %257 = vmatpush2.bf16.msra.mxu0 0
    %258 = vmatprep.subr.bf16.mxu0 0
    %259 = vmatpush2.bf16.msra.mxu0 0
    %260 = vmatprep.subr.bf16.mxu0 0
    %261 = vmatpush2.bf16.msra.mxu0 0
    %262 = vmatprep.subr.bf16.mxu0 0
    %263 = vmatpush2.bf16.msra.mxu0 0
    %264 = vmatprep.subr.bf16.mxu0 0
    %265 = vmatpush2.bf16.msra.mxu0 0
    %266 = vmatprep.subr.bf16.mxu0 0
    %267 = vmatpush2.bf16.msra.mxu0 0
    %268 = vmatprep.subr.bf16.mxu0 0
    %269 = vmatpush2.bf16.msra.mxu0 0
    %270 = vmatprep.subr.bf16.mxu0 0
    %271 = vmatpush2.bf16.msra.mxu0 0
    %272 = vmatprep.mubr.bf16.mxu0 0
    %273 = vmatmul.mubr.bf16.gmra.mxu0 %v55
    %v274 = vpop.f32.mrf.mxu0
    %v275 = vadd.f32 %v226, %v274
    %v276 = vpop.f32.mrf.mxu0
    %v277 = vpop.f32.mrf.mxu0
    %v278 = vadd.f32 %v226, %v277
    %v279 = vpop.f32.mrf.mxu0
    %280 = vdwg.mxu0
    %283 = vrot.lane.b32.xlu0 %v275, 32
    %v284 = vpop.permute.xlu0 %283
    %285 = vrot.lane.b32.xlu0 %v278, 32
    %v286 = vpop.permute.xlu0 %285
    %vm289 = vcmask 523520
    %290 = vst.msk [vmem:[#allocation2] sm:$0xff] %vm289, %v284
    %291 = vst.msk [vmem:[#allocation2 + $0x8] sm:$0xff] %vm289, %v286
    %v292 = vld [vmem:[%s3] sm:$0xf]
    %v293 = vld [vmem:[%s3 + $0x4] sm:$0xf]
    %v294 = vld [vmem:[%s3 + $0x8] sm:$0xf]
    %v295 = vld [vmem:[%s3 + $0xc] sm:$0xf]
    %v296 = vld [vmem:[%s6] sm:$0x1]
    %v298 = vlaneseq
    %v299 = vshrl.u32 %v298, 7
    %v300 = vsub.s32 0, %v299
    %v301 = vrot.slane %v296, %v300
    %v307 = vunpack.c.l.b16 %v292
    %v308 = vunpack.c.l.b16 %v293
    %v309 = vunpack.c.l.b16 %v294
    %v310 = vunpack.c.l.b16 %v295
    %v311 = vpack.c.b16 %v308, %v307
    %v312 = vpack.c.b16 %v310, %v309
    %315 = vmatprep.subr.bf16.mxu0 0
    %316 = vmatpush1.bf16.msra.mxu0 0
    %317 = vmatprep.subr.bf16.mxu0 0
    %318 = vmatpush1.bf16.msra.mxu0 0
    %319 = vmatprep.subr.bf16.mxu0 0
    %320 = vmatpush1.bf16.msra.mxu0 0
    %321 = vmatprep.subr.bf16.mxu0 0
    %322 = vmatpush1.bf16.msra.mxu0 0
    %323 = vmatprep.subr.bf16.mxu0 0
    %324 = vmatpush1.bf16.msra.mxu0 0
    %325 = vmatprep.subr.bf16.mxu0 0
    %326 = vmatpush1.bf16.msra.mxu0 0
    %327 = vmatprep.subr.bf16.mxu0 0
    %328 = vmatpush1.bf16.msra.mxu0 %v312
    %329 = vmatprep.subr.bf16.mxu0 0
    %330 = vmatpush1.bf16.msra.mxu0 %v311
    %331 = vmatprep.subr.bf16.mxu0 0
    %332 = vmatpush2.bf16.msra.mxu0 0
    %333 = vmatprep.subr.bf16.mxu0 0
    %334 = vmatpush2.bf16.msra.mxu0 0
    %335 = vmatprep.subr.bf16.mxu0 0
    %336 = vmatpush2.bf16.msra.mxu0 0
    %337 = vmatprep.subr.bf16.mxu0 0
    %338 = vmatpush2.bf16.msra.mxu0 0
    %339 = vmatprep.subr.bf16.mxu0 0
    %340 = vmatpush2.bf16.msra.mxu0 0
    %341 = vmatprep.subr.bf16.mxu0 0
    %342 = vmatpush2.bf16.msra.mxu0 0
    %343 = vmatprep.subr.bf16.mxu0 0
    %344 = vmatpush2.bf16.msra.mxu0 0
    %345 = vmatprep.subr.bf16.mxu0 0
    %346 = vmatpush2.bf16.msra.mxu0 0
    %347 = vmatprep.mubr.bf16.mxu0 0
    %348 = vmatmul.mubr.bf16.gmra.mxu0 %v55
    %v349 = vpop.f32.mrf.mxu0
    %v350 = vadd.f32 %v301, %v349
    %v351 = vpop.f32.mrf.mxu0
    %v352 = vpop.f32.mrf.mxu0
    %v353 = vadd.f32 %v301, %v352
    %v354 = vpop.f32.mrf.mxu0
    %355 = vdwg.mxu0
    %358 = vrot.lane.b32.xlu0 %v143, 96
    %v359 = vpop.permute.xlu0 %358
    %360 = vrot.lane.b32.xlu0 %v146, 96
    %v361 = vpop.permute.xlu0 %360
    %v364 = vadd.f32 %v350, %v359
    %v365 = vadd.f32 %v353, %v361
    %368 = vrot.lane.b32.xlu0 %v364, 64
    %v369 = vpop.permute.xlu0 %368
    %370 = vrot.lane.b32.xlu0 %v365, 64
    %v371 = vpop.permute.xlu0 %370
    %vm374 = vcmask 785920
    %375 = vst.msk [vmem:[#allocation2] sm:$0xff] %vm374, %v369
    %376 = vst.msk [vmem:[#allocation2 + $0x8] sm:$0xff] %vm374, %v371
    // Predicated region
    $region38: #{lora_qkv.1} parent=1 // pred_check
      _
    $region39: #{lora_qkv.1} parent=1 // pred_check_branch
      %378 = sbr.rel (0) target = $region41
    $region40: #{lora_qkv.1} parent=1 // pred_region
      %s380 = ssub.s32 256, 256
      %381 = vsyncadd [#allocation3], %s380
      %s382 = sshll.u32 [#allocation2], 4
      %s383 = int_to_ptr.vmem [resolvable:$true] %s382
      %388 = dma.vmem_to_hbm [thread:$0]  %s383, 256, %s9, [#allocation3], 128, 128, 8
    $region41: #{lora_qkv.1} parent=1 // pred_fallthru
      _
    // Predicated region
    $region42: #{lora_qkv.1} parent=1 // pred_check
      _
    $region43: #{lora_qkv.1} parent=1 // pred_check_branch
      %390 = sbr.rel (0) target = $region45
    $region44: #{lora_qkv.1} parent=1 // pred_region
      %391 = dma.done [#allocation3], 256
    $region45: #{lora_qkv.1} parent=1 // pred_fallthru
      _
    %392 = vsyncpa [#allocation3], 1

</llo_original>
